<compile_context>
chip_gen: v7x
topology: tpu7x:2x2x1
jax: 0.10.0
libtpu: 0.0.40
codegen_flags: <defaults>
</compile_context>

<pallas_src>
import functools
import math

import jax
import jax.numpy as jnp
from jax.experimental import pallas as pl
from jax.experimental.pallas import tpu as pltpu

LOG_STD_MAX = 2.0
LOG_STD_MIN = -20.0
LANE = 128  # lane-padded action width P


def actor_kernel(act_dim, obs_ref, w1_ref, b1_ref, w2_ref, b2_ref,
                 wh_ref, bh_ref, eps_ref, pi_ref, logp_ref):
    P = eps_ref.shape[-1]  # lane-padded action width (128)

    obs = obs_ref[...]                                                  # (tb, Dp)

    # input layer + ReLU
    h1 = jnp.dot(obs, w1_ref[...], preferred_element_type=jnp.float32)
    h1 = jnp.maximum(h1 + b1_ref[...], 0.0)                             # (tb, 128)

    # hidden layer + ReLU
    h2 = jnp.dot(h1, w2_ref[...], preferred_element_type=jnp.float32)
    h2 = jnp.maximum(h2 + b2_ref[...], 0.0)                             # (tb, 64)

    # fused heads: one MXU op produces [mu | log_std] in one (tb, 2P) result.
    heads = jnp.dot(h2, wh_ref[...], preferred_element_type=jnp.float32) + bh_ref[...]
    mu = heads[:, :P]                                                   # (tb, P)
    log_std = jnp.clip(heads[:, P:], LOG_STD_MIN, LOG_STD_MAX)          # (tb, P)
    # Padded lanes: zero weights/bias -> mu = 0, log_std = clip(0) = 0.

    std = jnp.exp(log_std)
    eps = eps_ref[...]                                                  # (tb, P), 0 in pad lanes
    pi = mu + std * eps                                                 # rsample; pad lanes -> 0

    # Normal log-prob with z = eps (exact, since pi = mu + std*eps) plus the
    # tanh-squash correction, reduced in a single cross-lane sum.
    # Pad lanes contribute exactly 0 (eps=0, log_std=0, corr(pi=0)=0).
    corr = 2.0 * (jnp.log(2.0) - pi - jax.nn.softplus(-2.0 * pi))
    per_lane = -0.5 * eps * eps - log_std - corr
    logp = jnp.sum(per_lane, axis=-1, keepdims=True)                    # (tb, 1)
    logp = logp - act_dim * 0.5 * jnp.log(2.0 * jnp.pi)                 # static constant

    # Lane-dense stores: full 128-wide unmasked vst for both outputs.
    pi_ref[...] = jnp.tanh(pi)
    logp_ref[...] = jnp.broadcast_to(logp, logp_ref.shape)


def actor_forward(obs, params, act_idx, eps, deterministic=False):
    """act_idx is a Python int (non-tensor branch of the PyTorch forward)."""
    w1, b1, w2, b2 = params["w1"], params["b1"], params["w2"], params["b2"]
    wmu, bmu = params["wmu"][act_idx], params["bmu"][act_idx]
    wls, bls = params["wls"][act_idx], params["bls"][act_idx]

    B, D = obs.shape
    A = wmu.shape[1]
    P = LANE

    # Fused + lane-padded head parameters (one-time preprocessing, folds under jit).
    wh = jnp.zeros((w2.shape[1], 2 * P), jnp.float32)
    wh = wh.at[:, :A].set(wmu).at[:, P:P + A].set(wls)
    bh = jnp.zeros((1, 2 * P), jnp.float32)
    bh = bh.at[:, :A].set(bmu).at[:, P:P + A].set(bls)

    # Lane-pad obs (and correspondingly w1 rows with zeros) so loads are lane-dense.
    Dp = ((D + LANE - 1) // LANE) * LANE
    obs_p = jnp.zeros((B, Dp), jnp.float32).at[:, :D].set(obs)
    w1_p = jnp.zeros((Dp, w1.shape[1]), jnp.float32).at[:D, :].set(w1)

    if deterministic:
        # Sample collapses to mu; logp is then logp of the mean (matches prior behavior).
        eps = jnp.zeros_like(eps)

    # Batch tiling: pad B to a multiple of 8, tile at up to 256 rows per grid step.
    Bp = ((B + 7) // 8) * 8
    tb = min(Bp, 256)
    Bp = ((Bp + tb - 1) // tb) * tb
    obs_p = jnp.zeros((Bp, Dp), jnp.float32).at[:B].set(obs_p)
    eps_p = jnp.zeros((Bp, P), jnp.float32).at[:B, :A].set(eps)

    grid = (Bp // tb,)
    kernel = functools.partial(actor_kernel, A)

    pi_p, logp_p = pl.pallas_call(
        kernel,
        out_shape=(jax.ShapeDtypeStruct((Bp, P), jnp.float32),
                   jax.ShapeDtypeStruct((Bp, P), jnp.float32)),
        grid=grid,
        in_specs=[
            pl.BlockSpec((tb, Dp), lambda i: (i, 0)),        # obs tile
            pl.BlockSpec(w1_p.shape, lambda i: (0, 0)),      # weights stay resident
            pl.BlockSpec(b1.shape, lambda i: (0, 0)),
            pl.BlockSpec(w2.shape, lambda i: (0, 0)),
            pl.BlockSpec(b2.shape, lambda i: (0, 0)),
            pl.BlockSpec(wh.shape, lambda i: (0, 0)),
            pl.BlockSpec(bh.shape, lambda i: (0, 0)),
            pl.BlockSpec((tb, P), lambda i: (i, 0)),         # eps tile
        ],
        out_specs=(pl.BlockSpec((tb, P), lambda i: (i, 0)),
                   pl.BlockSpec((tb, P), lambda i: (i, 0))),
        compiler_params=pltpu.CompilerParams(
            dimension_semantics=("parallel",)),              # shards batch across TCs on v7x
    )(obs_p, w1_p, b1, w2, b2, wh, bh, eps_p)

    return pi_p[:B, :A], logp_p[:B, 0]


def _linear_params(key, fan_in, fan_out):
    """Deterministic PyTorch-style (Kaiming-uniform-ish) init, stored as (in, out)."""
    kw, kb = jax.random.split(key)
    bound = 1.0 / math.sqrt(fan_in)
    w = jax.random.uniform(kw, (fan_in, fan_out), jnp.float32, -bound, bound)
    b = jax.random.uniform(kb, (1, fan_out), jnp.float32, -bound, bound)
    return w, b


def make_params(key, obs_dim, act_dim_list):
    keys = jax.random.split(key, 2 + 2 * len(act_dim_list))
    w1, b1 = _linear_params(keys[0], obs_dim, 128)
    w2, b2 = _linear_params(keys[1], 128, 64)
    wmu, bmu, wls, bls = [], [], [], []
    for i, a in enumerate(act_dim_list):
        w, b = _linear_params(keys[2 + 2 * i], 64, a)
        wmu.append(w); bmu.append(b)
        w, b = _linear_params(keys[3 + 2 * i], 64, a)
        wls.append(w); bls.append(b)
    return {"w1": w1, "b1": b1, "w2": w2, "b2": b2,
            "wmu": wmu, "bmu": bmu, "wls": wls, "bls": bls}


def actor_forward_ref(obs, params, act_idx, eps):
    """Pure-JAX reference (mirrors the PyTorch forward)."""
    h1 = jax.nn.relu(obs @ params["w1"] + params["b1"])
    h2 = jax.nn.relu(h1 @ params["w2"] + params["b2"])
    mu = h2 @ params["wmu"][act_idx] + params["bmu"][act_idx]
    log_std = jnp.clip(h2 @ params["wls"][act_idx] + params["bls"][act_idx],
                       LOG_STD_MIN, LOG_STD_MAX)
    std = jnp.exp(log_std)
    pi = mu + std * eps
    logp = jnp.sum(-0.5 * ((pi - mu) / std) ** 2 - log_std
                   - 0.5 * jnp.log(2 * jnp.pi), axis=-1)
    logp -= jnp.sum(2.0 * (jnp.log(2.0) - pi - jax.nn.softplus(-2.0 * pi)), axis=-1)
    return jnp.tanh(pi), logp


if __name__ == "__main__":
    key = jax.random.PRNGKey(0)
    k_param, k_obs, k_eps = jax.random.split(key, 3)

    obs_dim = 16
    act_dim_list = [6, 4]
    act_limit_list = [1.0, 1.0]  # NOTE: PyTorch forward never applies act_limit
    batch = 8
    act_idx = 0

    params = make_params(k_param, obs_dim, act_dim_list)
    obs = jax.random.normal(k_obs, (batch, obs_dim), jnp.float32)
    eps = jax.random.normal(k_eps, (batch, act_dim_list[act_idx]), jnp.float32)

    pi_action, logp_pi = actor_forward(obs, params, act_idx, eps,
                                       deterministic=False)
    jax.block_until_ready((pi_action, logp_pi))

    pi_ref, logp_ref = actor_forward_ref(obs, params, act_idx, eps)
    assert pi_action.shape == pi_ref.shape and logp_pi.shape == logp_ref.shape
    assert jnp.allclose(pi_action, pi_ref, atol=1e-5, rtol=1e-5)
    assert jnp.allclose(logp_pi, logp_ref, atol=1e-4, rtol=1e-5)

    print("KERNEL_OK")
</pallas_src>

<mosaic_0001>
module attributes {stable_mosaic.version = 11 : i64} {
  func.func @actor_kernel(%arg0: i32, %arg1: memref<8x128xf32, #tpu.memory_space<vmem>>, %arg2: memref<128x128xf32, #tpu.memory_space<vmem>>, %arg3: memref<1x128xf32, #tpu.memory_space<vmem>>, %arg4: memref<128x64xf32, #tpu.memory_space<vmem>>, %arg5: memref<1x64xf32, #tpu.memory_space<vmem>>, %arg6: memref<64x256xf32, #tpu.memory_space<vmem>>, %arg7: memref<1x256xf32, #tpu.memory_space<vmem>>, %arg8: memref<8x128xf32, #tpu.memory_space<vmem>>, %arg9: memref<8x128xf32, #tpu.memory_space<vmem>>, %arg10: memref<8x128xf32, #tpu.memory_space<vmem>>) attributes {dimension_semantics = [#tpu.dimension_semantics<parallel>], iteration_bounds = array<i64: 1>, scalar_prefetch = 0 : i64, scratch_operands = 0 : i64, tpu.core_type = #tpu.core_type<tc>, window_params = [{transform_indices = @transform_0, window_bounds = array<i64: 8, 128>}, {pipeline_mode = #tpu.pipeline_mode<synchronous>, transform_indices = @transform_1, window_bounds = array<i64: 128, 128>}, {pipeline_mode = #tpu.pipeline_mode<synchronous>, transform_indices = @transform_2, window_bounds = array<i64: 1, 128>}, {pipeline_mode = #tpu.pipeline_mode<synchronous>, transform_indices = @transform_3, window_bounds = array<i64: 128, 64>}, {pipeline_mode = #tpu.pipeline_mode<synchronous>, transform_indices = @transform_4, window_bounds = array<i64: 1, 64>}, {pipeline_mode = #tpu.pipeline_mode<synchronous>, transform_indices = @transform_5, window_bounds = array<i64: 64, 256>}, {pipeline_mode = #tpu.pipeline_mode<synchronous>, transform_indices = @transform_6, window_bounds = array<i64: 1, 256>}, {transform_indices = @transform_7, window_bounds = array<i64: 8, 128>}, {transform_indices = @transform_8, window_bounds = array<i64: 8, 128>}, {transform_indices = @transform_9, window_bounds = array<i64: 8, 128>}]} {
    %c0 = arith.constant 0 : index
    %c0_0 = arith.constant 0 : index
    %0 = vector.load %arg1[%c0, %c0_0] : memref<8x128xf32, #tpu.memory_space<vmem>>, vector<8x128xf32>
    %c0_1 = arith.constant 0 : index
    %c0_2 = arith.constant 0 : index
    %1 = vector.load %arg2[%c0_1, %c0_2] : memref<128x128xf32, #tpu.memory_space<vmem>>, vector<128x128xf32>
    %cst = arith.constant dense<0.000000e+00> : vector<8x128xf32>
    %2 = tpu.matmul %0, %1, %cst {dimension_numbers = #tpu.dot_dimension_numbers<[1], [0], [0], [1], [0, 0, 1, 1], [], []>} : vector<8x128xf32>, vector<128x128xf32>, vector<8x128xf32> -> vector<8x128xf32>
    %c0_3 = arith.constant 0 : index
    %c0_4 = arith.constant 0 : index
    %3 = vector.load %arg3[%c0_3, %c0_4] : memref<1x128xf32, #tpu.memory_space<vmem>>, vector<1x128xf32>
    %4 = vector.broadcast %3 : vector<1x128xf32> to vector<8x128xf32>
    %5 = arith.addf %2, %4 : vector<8x128xf32>
    %cst_5 = arith.constant 0.000000e+00 : f32
    %6 = vector.broadcast %cst_5 : f32 to vector<8x128xf32>
    %7 = arith.maximumf %5, %6 : vector<8x128xf32>
    %c0_6 = arith.constant 0 : index
    %c0_7 = arith.constant 0 : index
    %8 = vector.load %arg4[%c0_6, %c0_7] : memref<128x64xf32, #tpu.memory_space<vmem>>, vector<128x64xf32>
    %cst_8 = arith.constant dense<0.000000e+00> : vector<8x64xf32>
    %9 = tpu.matmul %7, %8, %cst_8 {dimension_numbers = #tpu.dot_dimension_numbers<[1], [0], [0], [1], [0, 0, 1, 1], [], []>} : vector<8x128xf32>, vector<128x64xf32>, vector<8x64xf32> -> vector<8x64xf32>
    %c0_9 = arith.constant 0 : index
    %c0_10 = arith.constant 0 : index
    %10 = vector.load %arg5[%c0_9, %c0_10] : memref<1x64xf32, #tpu.memory_space<vmem>>, vector<1x64xf32>
    %11 = vector.broadcast %10 : vector<1x64xf32> to vector<8x64xf32>
    %12 = arith.addf %9, %11 : vector<8x64xf32>
    %cst_11 = arith.constant 0.000000e+00 : f32
    %13 = vector.broadcast %cst_11 : f32 to vector<8x64xf32>
    %14 = arith.maximumf %12, %13 : vector<8x64xf32>
    %c0_12 = arith.constant 0 : index
    %c0_13 = arith.constant 0 : index
    %15 = vector.load %arg6[%c0_12, %c0_13] : memref<64x256xf32, #tpu.memory_space<vmem>>, vector<64x256xf32>
    %cst_14 = arith.constant dense<0.000000e+00> : vector<8x256xf32>
    %16 = tpu.matmul %14, %15, %cst_14 {dimension_numbers = #tpu.dot_dimension_numbers<[1], [0], [0], [1], [0, 0, 1, 1], [], []>} : vector<8x64xf32>, vector<64x256xf32>, vector<8x256xf32> -> vector<8x256xf32>
    %c0_15 = arith.constant 0 : index
    %c0_16 = arith.constant 0 : index
    %17 = vector.load %arg7[%c0_15, %c0_16] : memref<1x256xf32, #tpu.memory_space<vmem>>, vector<1x256xf32>
    %18 = vector.broadcast %17 : vector<1x256xf32> to vector<8x256xf32>
    %19 = arith.addf %16, %18 : vector<8x256xf32>
    %20 = vector.extract_strided_slice %19 {offsets = [0, 0], sizes = [8, 128], strides = [1, 1]} : vector<8x256xf32> to vector<8x128xf32>
    %21 = vector.extract_strided_slice %19 {offsets = [0, 128], sizes = [8, 128], strides = [1, 1]} : vector<8x256xf32> to vector<8x128xf32>
    %cst_17 = arith.constant -2.000000e+01 : f32
    %cst_18 = arith.constant 2.000000e+00 : f32
    %22 = vector.broadcast %cst_17 : f32 to vector<8x128xf32>
    %23 = arith.maximumf %22, %21 : vector<8x128xf32>
    %24 = vector.broadcast %cst_18 : f32 to vector<8x128xf32>
    %25 = arith.minimumf %24, %23 : vector<8x128xf32>
    %26 = math.exp %25 : vector<8x128xf32>
    %c0_19 = arith.constant 0 : index
    %c0_20 = arith.constant 0 : index
    %27 = vector.load %arg8[%c0_19, %c0_20] : memref<8x128xf32, #tpu.memory_space<vmem>>, vector<8x128xf32>
    %28 = arith.mulf %26, %27 : vector<8x128xf32>
    %29 = arith.addf %20, %28 : vector<8x128xf32>
    %cst_21 = arith.constant 2.000000e+00 : f32
    %30 = math.log %cst_21 : f32
    %31 = vector.broadcast %30 : f32 to vector<8x128xf32>
    %32 = arith.subf %31, %29 : vector<8x128xf32>
    %cst_22 = arith.constant -2.000000e+00 : f32
    %33 = vector.broadcast %cst_22 : f32 to vector<8x128xf32>
    %34 = arith.mulf %33, %29 : vector<8x128xf32>
    %cst_23 = arith.constant 0.000000e+00 : f32
    %35 = vector.broadcast %cst_23 : f32 to vector<8x128xf32>
    %36 = arith.maximumf %34, %35 : vector<8x128xf32>
    %37 = vector.broadcast %cst_23 : f32 to vector<8x128xf32>
    %38 = arith.subf %34, %37 : vector<8x128xf32>
    %39 = arith.cmpf one, %38, %38 : vector<8x128xf32>
    %40 = vector.broadcast %cst_23 : f32 to vector<8x128xf32>
    %41 = arith.addf %34, %40 : vector<8x128xf32>
    %42 = math.absf %38 : vector<8x128xf32>
    %cst_24 = arith.constant 0.000000e+00 : f32
    %43 = vector.broadcast %cst_24 : f32 to vector<8x128xf32>
    %44 = arith.subf %43, %42 : vector<8x128xf32>
    %45 = math.exp %44 : vector<8x128xf32>
    %46 = math.log1p %45 : vector<8x128xf32>
    %47 = arith.addf %36, %46 : vector<8x128xf32>
    %48 = arith.select %39, %41, %47 : vector<8x128xi1>, vector<8x128xf32>
    %49 = arith.subf %32, %48 : vector<8x128xf32>
    %cst_25 = arith.constant 2.000000e+00 : f32
    %50 = vector.broadcast %cst_25 : f32 to vector<8x128xf32>
    %51 = arith.mulf %50, %49 : vector<8x128xf32>
    %cst_26 = arith.constant -5.000000e-01 : f32
    %52 = vector.broadcast %cst_26 : f32 to vector<8x128xf32>
    %53 = arith.mulf %52, %27 : vector<8x128xf32>
    %54 = arith.mulf %53, %27 : vector<8x128xf32>
    %55 = arith.subf %54, %25 : vector<8x128xf32>
    %56 = arith.subf %55, %51 : vector<8x128xf32>
    %cst_27 = arith.constant dense<0.000000e+00> : vector<8xf32>
    %57 = vector.multi_reduction <add>, %56, %cst_27 [1] : vector<8x128xf32> to vector<8xf32>
    %58 = vector.shape_cast %57 : vector<8xf32> to vector<8x1xf32>
    %cst_28 = arith.constant 6.28318548 : f32
    %59 = math.log %cst_28 : f32
    %cst_29 = arith.constant 3.000000e+00 : f32
    %60 = arith.mulf %cst_29, %59 : f32
    %61 = vector.broadcast %60 : f32 to vector<8x1xf32>
    %62 = arith.subf %58, %61 : vector<8x1xf32>
    %63 = math.tanh %29 : vector<8x128xf32>
    %c0_30 = arith.constant 0 : index
    %c0_31 = arith.constant 0 : index
    %64 = vector.load %arg9[%c0_30, %c0_31] : memref<8x128xf32, #tpu.memory_space<vmem>>, vector<8x128xf32>
    tpu.vector_store %arg9[%c0_30, %c0_31], %63 {strides = array<i32>} : memref<8x128xf32, #tpu.memory_space<vmem>>, vector<8x128xf32>,
    %65 = vector.shape_cast %62 : vector<8x1xf32> to vector<8x1xf32>
    %66 = vector.broadcast %65 : vector<8x1xf32> to vector<8x128xf32>
    %c0_32 = arith.constant 0 : index
    %c0_33 = arith.constant 0 : index
    %67 = vector.load %arg10[%c0_32, %c0_33] : memref<8x128xf32, #tpu.memory_space<vmem>>, vector<8x128xf32>
    tpu.vector_store %arg10[%c0_32, %c0_33], %66 {strides = array<i32>} : memref<8x128xf32, #tpu.memory_space<vmem>>, vector<8x128xf32>,
    return
  }
  func.func @transform_0(%arg0: i32) -> (i32, i32) {
    %c0_i32 = arith.constant 0 : i32
    %c0_i32_0 = arith.constant 0 : i32
    return %arg0, %c0_i32 : i32, i32
  }
  func.func @transform_1(%arg0: i32) -> (i32, i32) {
    %c0_i32 = arith.constant 0 : i32
    %c0_i32_0 = arith.constant 0 : i32
    %c0_i32_1 = arith.constant 0 : i32
    return %c0_i32, %c0_i32_0 : i32, i32
  }
  func.func @transform_2(%arg0: i32) -> (i32, i32) {
    %c0_i32 = arith.constant 0 : i32
    %c0_i32_0 = arith.constant 0 : i32
    %c0_i32_1 = arith.constant 0 : i32
    return %c0_i32, %c0_i32_0 : i32, i32
  }
  func.func @transform_3(%arg0: i32) -> (i32, i32) {
    %c0_i32 = arith.constant 0 : i32
    %c0_i32_0 = arith.constant 0 : i32
    %c0_i32_1 = arith.constant 0 : i32
    return %c0_i32, %c0_i32_0 : i32, i32
  }
  func.func @transform_4(%arg0: i32) -> (i32, i32) {
    %c0_i32 = arith.constant 0 : i32
    %c0_i32_0 = arith.constant 0 : i32
    %c0_i32_1 = arith.constant 0 : i32
    return %c0_i32, %c0_i32_0 : i32, i32
  }
  func.func @transform_5(%arg0: i32) -> (i32, i32) {
    %c0_i32 = arith.constant 0 : i32
    %c0_i32_0 = arith.constant 0 : i32
    %c0_i32_1 = arith.constant 0 : i32
    return %c0_i32, %c0_i32_0 : i32, i32
  }
  func.func @transform_6(%arg0: i32) -> (i32, i32) {
    %c0_i32 = arith.constant 0 : i32
    %c0_i32_0 = arith.constant 0 : i32
    %c0_i32_1 = arith.constant 0 : i32
    return %c0_i32, %c0_i32_0 : i32, i32
  }
  func.func @transform_7(%arg0: i32) -> (i32, i32) {
    %c0_i32 = arith.constant 0 : i32
    %c0_i32_0 = arith.constant 0 : i32
    return %arg0, %c0_i32 : i32, i32
  }
  func.func @transform_8(%arg0: i32) -> (i32, i32) {
    %c0_i32 = arith.constant 0 : i32
    %c0_i32_0 = arith.constant 0 : i32
    return %arg0, %c0_i32 : i32, i32
  }
  func.func @transform_9(%arg0: i32) -> (i32, i32) {
    %c0_i32 = arith.constant 0 : i32
    %c0_i32_0 = arith.constant 0 : i32
    return %arg0, %c0_i32 : i32, i32
  }
}

</mosaic_0001>

<llo_original>
// kernel: tpu_custom_call.1
$region0: #{tpu_custom_call.1}
  #allocation0 [shape = 'u32[]', space=smem, size = 0x4, offset = 0x4, fixed_abs, tag = 'smem constant byte address 0x4 - core index']
  #allocation1 [shape = 'u32[144,128]{1,0:T(1,128)}', space=vmem, size = 0x12000, scoped, tag = 'internal scratch']
  %s0 = inlined_call_operand.vmem [shape: f32[8,128], index: 0, kind: input, shape index: {}]
  %s1 = inlined_call_operand.vmem [shape: f32[128,128], index: 1, kind: input, shape index: {}]
  %s2 = inlined_call_operand.vmem [shape: f32[1,128], index: 2, kind: input, shape index: {}]
  %s3 = inlined_call_operand.vmem [shape: f32[128,64], index: 3, kind: input, shape index: {}]
  %s4 = inlined_call_operand.vmem [shape: f32[1,64], index: 4, kind: input, shape index: {}]
  %s5 = inlined_call_operand.hbm [shape: f32[64,256], index: 5, kind: input, shape index: {}]
  %s6 = inlined_call_operand.vmem [shape: f32[1,256], index: 6, kind: input, shape index: {}]
  %s7 = inlined_call_operand.vmem [shape: f32[8,128], index: 7, kind: input, shape index: {}]
  %s8 = inlined_call_operand.hbm [shape: f32[8,128], index: 8, kind: output, shape index: {0}]
  %s9 = inlined_call_operand.hbm [shape: f32[8,128], index: 9, kind: output, shape index: {1}]
  %10 = xla_tuple %s8, %s9
  %s11 = sld [smem:[#allocation0]]
  $region54: #{tpu_custom_call.1} parent=0
    _
  %s13 = ssub.s32 1, %s11
  %s14 = scalar_select 0, %s13, %s11
  $region1: #{tpu_custom_call.1} parent=0
    #allocation2 [shape = 'u8[65536]{0}', space=vmem, size = 0x10000, scoped, tag = 'input window, operand 5, single buffered']
    #allocation3 [shape = 's32[1]{0}', space=sflag, size = 0x4, scoped, tag = 'scoped memory for tpu_custom_call.1']
    #allocation4 [shape = 's32[1]{0}', space=sflag, size = 0x4, scoped, tag = 'scoped memory for tpu_custom_call.1']
    #allocation5 [shape = 'u8[4096]{0}', space=vmem, size = 0x1000, scoped, tag = 'output window, operand 0, single buffered']
    #allocation6 [shape = 'u8[4096]{0}', space=vmem, size = 0x1000, scoped, tag = 'output window, operand 1, single buffered']
    #allocation7 [shape = 's32[1]{0}', space=sflag, size = 0x4, scoped, tag = 'scoped memory for tpu_custom_call.1']
    %15 = vsyncpa [#allocation3], 0
    %16 = vsyncpa [#allocation4], 0
    %17 = vsyncpa [#allocation7], 0
    // Predicated region
    $region2: #{tpu_custom_call.1} parent=1 // pred_check
      _
    $region3: #{tpu_custom_call.1} parent=1 // pred_check_branch
      %19 = sbr.rel (0) target = $region5
    $region4: #{tpu_custom_call.1} parent=1 // pred_region
      _
    $region5: #{tpu_custom_call.1} parent=1 // pred_fallthru
      _
    // Predicated region
    $region6: #{tpu_custom_call.1} parent=1 // pred_check
      _
    $region7: #{tpu_custom_call.1} parent=1 // pred_check_branch
      %21 = sbr.rel (0) target = $region9
    $region8: #{tpu_custom_call.1} parent=1 // pred_region
      _
    $region9: #{tpu_custom_call.1} parent=1 // pred_fallthru
      _
    // Predicated region
    $region10: #{tpu_custom_call.1} parent=1 // pred_check
      _
    $region11: #{tpu_custom_call.1} parent=1 // pred_check_branch
      %23 = sbr.rel (0) target = $region13
    $region12: #{tpu_custom_call.1} parent=1 // pred_region
      _
    $region13: #{tpu_custom_call.1} parent=1 // pred_fallthru
      _
    // Predicated region
    $region14: #{tpu_custom_call.1} parent=1 // pred_check
      _
    $region15: #{tpu_custom_call.1} parent=1 // pred_check_branch
      %25 = sbr.rel (0) target = $region17
    $region16: #{tpu_custom_call.1} parent=1 // pred_region
      _
    $region17: #{tpu_custom_call.1} parent=1 // pred_fallthru
      _
    // Predicated region
    $region18: #{tpu_custom_call.1} parent=1 // pred_check
      _
    $region19: #{tpu_custom_call.1} parent=1 // pred_check_branch
      %27 = sbr.rel (0) target = $region21
    $region20: #{tpu_custom_call.1} parent=1 // pred_region
      _
    $region21: #{tpu_custom_call.1} parent=1 // pred_fallthru
      _
    // Predicated region
    $region22: #{tpu_custom_call.1} parent=1 // pred_check
      _
    $region23: #{tpu_custom_call.1} parent=1 // pred_check_branch
      %29 = sbr.rel (0) target = $region25
    $region24: #{tpu_custom_call.1} parent=1 // pred_region
      %s31 = ssub.s32 2048, 2048
      %32 = vsyncadd [#allocation3], %s31
      %s33 = sshll.u32 [#allocation2], 4
      %s34 = int_to_ptr.vmem [resolvable:$true] %s33
      %39 = dma.hbm_to_vmem [thread:$0]  %s5, 2048, %s34, [#allocation3], 256, 256, 16
    $region25: #{tpu_custom_call.1} parent=1 // pred_fallthru
      _
    // Predicated region
    $region26: #{tpu_custom_call.1} parent=1 // pred_check
      _
    $region27: #{tpu_custom_call.1} parent=1 // pred_check_branch
      %41 = sbr.rel (0) target = $region29
    $region28: #{tpu_custom_call.1} parent=1 // pred_region
      _
    $region29: #{tpu_custom_call.1} parent=1 // pred_fallthru
      _
    // Predicated region
    $region30: #{tpu_custom_call.1} parent=1 // pred_check
      _
    $region31: #{tpu_custom_call.1} parent=1 // pred_check_branch
      %43 = sbr.rel (0) target = $region33
    $region32: #{tpu_custom_call.1} parent=1 // pred_region
      _
    $region33: #{tpu_custom_call.1} parent=1 // pred_fallthru
      _
    // Predicated region
    $region34: #{tpu_custom_call.1} parent=1 // pred_check
      _
    $region35: #{tpu_custom_call.1} parent=1 // pred_check_branch
      %45 = sbr.rel (0) target = $region37
    $region36: #{tpu_custom_call.1} parent=1 // pred_region
      %46 = dma.done [#allocation3], 2048
    $region37: #{tpu_custom_call.1} parent=1 // pred_fallthru
      _
    %v47 = vld [vmem:[%s0] sm:$0xff]
    %v48 = vld [vmem:[%s1] sm:$0xff]
    %v49 = vld [vmem:[%s1 + $0x8] sm:$0xff]
    %v50 = vld [vmem:[%s1 + $0x10] sm:$0xff]
    %v51 = vld [vmem:[%s1 + $0x18] sm:$0xff]
    %v52 = vld [vmem:[%s1 + $0x20] sm:$0xff]
    %v53 = vld [vmem:[%s1 + $0x28] sm:$0xff]
    %v54 = vld [vmem:[%s1 + $0x30] sm:$0xff]
    %v55 = vld [vmem:[%s1 + $0x38] sm:$0xff]
    %v56 = vld [vmem:[%s1 + $0x40] sm:$0xff]
    %v57 = vld [vmem:[%s1 + $0x48] sm:$0xff]
    %v58 = vld [vmem:[%s1 + $0x50] sm:$0xff]
    %v59 = vld [vmem:[%s1 + $0x58] sm:$0xff]
    %v60 = vld [vmem:[%s1 + $0x60] sm:$0xff]
    %v61 = vld [vmem:[%s1 + $0x68] sm:$0xff]
    %v62 = vld [vmem:[%s1 + $0x70] sm:$0xff]
    %v63 = vld [vmem:[%s1 + $0x78] sm:$0xff]
    %v64 = vld [vmem:[%s2] sm:$0x1]
    %v66 = vlaneseq
    %v67 = vshrl.u32 %v66, 7
    %v68 = vsub.s32 0, %v67
    %v69 = vrot.slane %v64, %v68
    %71 = vmatprep.subr.mxu0 0.0
    %72 = vmatpush1.msra.mxu0 %v48
    %73 = vmatprep.subr.mxu0 0.0
    %74 = vmatpush1.msra.mxu0 %v49
    %75 = vmatprep.subr.mxu0 0.0
    %76 = vmatpush1.msra.mxu0 %v50
    %77 = vmatprep.subr.mxu0 0.0
    %78 = vmatpush1.msra.mxu0 %v51
    %79 = vmatprep.subr.mxu0 0.0
    %80 = vmatpush1.msra.mxu0 %v52
    %81 = vmatprep.subr.mxu0 0.0
    %82 = vmatpush1.msra.mxu0 %v53
    %83 = vmatprep.subr.mxu0 0.0
    %84 = vmatpush1.msra.mxu0 %v54
    %85 = vmatprep.subr.mxu0 0.0
    %86 = vmatpush1.msra.mxu0 %v55
    %87 = vmatprep.subr.mxu0 0.0
    %88 = vmatpush1.msra.mxu0 %v56
    %89 = vmatprep.subr.mxu0 0.0
    %90 = vmatpush1.msra.mxu0 %v57
    %91 = vmatprep.subr.mxu0 0.0
    %92 = vmatpush1.msra.mxu0 %v58
    %93 = vmatprep.subr.mxu0 0.0
    %94 = vmatpush1.msra.mxu0 %v59
    %95 = vmatprep.subr.mxu0 0.0
    %96 = vmatpush1.msra.mxu0 %v60
    %97 = vmatprep.subr.mxu0 0.0
    %98 = vmatpush1.msra.mxu0 %v61
    %99 = vmatprep.subr.mxu0 0.0
    %100 = vmatpush1.msra.mxu0 %v62
    %101 = vmatprep.subr.mxu0 0.0
    %102 = vmatpush1.msra.mxu0 %v63
    %103 = vmatprep.subr.mxu0 0.0
    %104 = vmatpush1.msra.mxu0 0.0
    %105 = vmatprep.subr.mxu0 0.0
    %106 = vmatpush1.msra.mxu0 0.0
    %107 = vmatprep.subr.mxu0 0.0
    %108 = vmatpush1.msra.mxu0 0.0
    %109 = vmatprep.subr.mxu0 0.0
    %110 = vmatpush1.msra.mxu0 0.0
    %111 = vmatprep.subr.mxu0 0.0
    %112 = vmatpush1.msra.mxu0 0.0
    %113 = vmatprep.subr.mxu0 0.0
    %114 = vmatpush1.msra.mxu0 0.0
    %115 = vmatprep.subr.mxu0 0.0
    %116 = vmatpush1.msra.mxu0 0.0
    %117 = vmatprep.subr.mxu0 0.0
    %118 = vmatpush1.msra.mxu0 0.0
    %119 = vmatprep.subr.mxu0 0.0
    %120 = vmatpush1.msra.mxu0 0.0
    %121 = vmatprep.subr.mxu0 0.0
    %122 = vmatpush1.msra.mxu0 0.0
    %123 = vmatprep.subr.mxu0 0.0
    %124 = vmatpush1.msra.mxu0 0.0
    %125 = vmatprep.subr.mxu0 0.0
    %126 = vmatpush1.msra.mxu0 0.0
    %127 = vmatprep.subr.mxu0 0.0
    %128 = vmatpush1.msra.mxu0 0.0
    %129 = vmatprep.subr.mxu0 0.0
    %130 = vmatpush1.msra.mxu0 0.0
    %131 = vmatprep.subr.mxu0 0.0
    %132 = vmatpush1.msra.mxu0 0.0
    %133 = vmatprep.subr.mxu0 0.0
    %134 = vmatpush1.msra.mxu0 0.0
    %135 = vmatprep.mubr.f32.mxu0 0.0
    %136 = vmatmul.mubr.f32.gmra.mrb[0].mxu0 %v47
    %v137 = vpop.f32.mrb[0].mxu0
    %v138 = vadd.f32 %v69, %v137
    %v139 = vpop.f32.mrb[0].mxu0
    %140 = vdwg.mxu0
    %v141 = vmax.f32 %v138, 0.0
    %v142 = vld [vmem:[%s3] sm:$0xff]
    %v143 = vld [vmem:[%s3 + $0x8] sm:$0xff]
    %v144 = vld [vmem:[%s3 + $0x10] sm:$0xff]
    %v145 = vld [vmem:[%s3 + $0x18] sm:$0xff]
    %v146 = vld [vmem:[%s3 + $0x20] sm:$0xff]
    %v147 = vld [vmem:[%s3 + $0x28] sm:$0xff]
    %v148 = vld [vmem:[%s3 + $0x30] sm:$0xff]
    %v149 = vld [vmem:[%s3 + $0x38] sm:$0xff]
    %v150 = vld [vmem:[%s3 + $0x40] sm:$0xff]
    %v151 = vld [vmem:[%s3 + $0x48] sm:$0xff]
    %v152 = vld [vmem:[%s3 + $0x50] sm:$0xff]
    %v153 = vld [vmem:[%s3 + $0x58] sm:$0xff]
    %v154 = vld [vmem:[%s3 + $0x60] sm:$0xff]
    %v155 = vld [vmem:[%s3 + $0x68] sm:$0xff]
    %v156 = vld [vmem:[%s3 + $0x70] sm:$0xff]
    %v157 = vld [vmem:[%s3 + $0x78] sm:$0xff]
    %v158 = vld [vmem:[%s4] sm:$0x1]
    %v160 = vlaneseq
    %v161 = vshrl.u32 %v160, 7
    %v162 = vsub.s32 0, %v161
    %v163 = vrot.slane %v158, %v162
    %165 = vmatprep.subr.mxu0 0.0
    %166 = vmatpush1.msra.mxu0 %v142
    %167 = vmatprep.subr.mxu0 0.0
    %168 = vmatpush1.msra.mxu0 %v143
    %169 = vmatprep.subr.mxu0 0.0
    %170 = vmatpush1.msra.mxu0 %v144
    %171 = vmatprep.subr.mxu0 0.0
    %172 = vmatpush1.msra.mxu0 %v145
    %173 = vmatprep.subr.mxu0 0.0
    %174 = vmatpush1.msra.mxu0 %v146
    %175 = vmatprep.subr.mxu0 0.0
    %176 = vmatpush1.msra.mxu0 %v147
    %177 = vmatprep.subr.mxu0 0.0
    %178 = vmatpush1.msra.mxu0 %v148
    %179 = vmatprep.subr.mxu0 0.0
    %180 = vmatpush1.msra.mxu0 %v149
    %181 = vmatprep.subr.mxu0 0.0
    %182 = vmatpush1.msra.mxu0 %v150
    %183 = vmatprep.subr.mxu0 0.0
    %184 = vmatpush1.msra.mxu0 %v151
    %185 = vmatprep.subr.mxu0 0.0
    %186 = vmatpush1.msra.mxu0 %v152
    %187 = vmatprep.subr.mxu0 0.0
    %188 = vmatpush1.msra.mxu0 %v153
    %189 = vmatprep.subr.mxu0 0.0
    %190 = vmatpush1.msra.mxu0 %v154
    %191 = vmatprep.subr.mxu0 0.0
    %192 = vmatpush1.msra.mxu0 %v155
    %193 = vmatprep.subr.mxu0 0.0
    %194 = vmatpush1.msra.mxu0 %v156
    %195 = vmatprep.subr.mxu0 0.0
    %196 = vmatpush1.msra.mxu0 %v157
    %197 = vmatprep.subr.mxu0 0.0
    %198 = vmatpush1.msra.mxu0 0.0
    %199 = vmatprep.subr.mxu0 0.0
    %200 = vmatpush1.msra.mxu0 0.0
    %201 = vmatprep.subr.mxu0 0.0
    %202 = vmatpush1.msra.mxu0 0.0
    %203 = vmatprep.subr.mxu0 0.0
    %204 = vmatpush1.msra.mxu0 0.0
    %205 = vmatprep.subr.mxu0 0.0
    %206 = vmatpush1.msra.mxu0 0.0
    %207 = vmatprep.subr.mxu0 0.0
    %208 = vmatpush1.msra.mxu0 0.0
    %209 = vmatprep.subr.mxu0 0.0
    %210 = vmatpush1.msra.mxu0 0.0
    %211 = vmatprep.subr.mxu0 0.0
    %212 = vmatpush1.msra.mxu0 0.0
    %213 = vmatprep.subr.mxu0 0.0
    %214 = vmatpush1.msra.mxu0 0.0
    %215 = vmatprep.subr.mxu0 0.0
    %216 = vmatpush1.msra.mxu0 0.0
    %217 = vmatprep.subr.mxu0 0.0
    %218 = vmatpush1.msra.mxu0 0.0
    %219 = vmatprep.subr.mxu0 0.0
    %220 = vmatpush1.msra.mxu0 0.0
    %221 = vmatprep.subr.mxu0 0.0
    %222 = vmatpush1.msra.mxu0 0.0
    %223 = vmatprep.subr.mxu0 0.0
    %224 = vmatpush1.msra.mxu0 0.0
    %225 = vmatprep.subr.mxu0 0.0
    %226 = vmatpush1.msra.mxu0 0.0
    %227 = vmatprep.subr.mxu0 0.0
    %228 = vmatpush1.msra.mxu0 0.0
    %229 = vmatprep.mubr.f32.mxu0 0.0
    %230 = vmatmul.mubr.f32.gmra.mrb[0].mxu0 %v141
    %v231 = vpop.f32.mrb[0].mxu0
    %v232 = vadd.f32 %v163, %v231
    %v233 = vpop.f32.mrb[0].mxu0
    %234 = vdwg.mxu0
    %v235 = vmax.f32 %v232, 0.0
    %v236 = vld [vmem:[#allocation2] sm:$0xff]
    %v237 = vld [vmem:[#allocation2 + $0x8] sm:$0xff]
    %v238 = vld [vmem:[#allocation2 + $0x10] sm:$0xff]
    %v239 = vld [vmem:[#allocation2 + $0x18] sm:$0xff]
    %v240 = vld [vmem:[#allocation2 + $0x20] sm:$0xff]
    %v241 = vld [vmem:[#allocation2 + $0x28] sm:$0xff]
    %v242 = vld [vmem:[#allocation2 + $0x30] sm:$0xff]
    %v243 = vld [vmem:[#allocation2 + $0x38] sm:$0xff]
    %v244 = vld [vmem:[#allocation2 + $0x40] sm:$0xff]
    %v245 = vld [vmem:[#allocation2 + $0x48] sm:$0xff]
    %v246 = vld [vmem:[#allocation2 + $0x50] sm:$0xff]
    %v247 = vld [vmem:[#allocation2 + $0x58] sm:$0xff]
    %v248 = vld [vmem:[#allocation2 + $0x60] sm:$0xff]
    %v249 = vld [vmem:[#allocation2 + $0x68] sm:$0xff]
    %v250 = vld [vmem:[#allocation2 + $0x70] sm:$0xff]
    %v251 = vld [vmem:[#allocation2 + $0x78] sm:$0xff]
    %v252 = vld [vmem:[%s6] sm:$0x3]
    %v254 = vlaneseq
    %v255 = vshrl.u32 %v254, 7
    %v256 = vsub.s32 0, %v255
    %v257 = vrot.slane %v252, %v256
    %v258 = vlaneseq
    %v259 = vshrl.u32 %v258, 7
    %v260 = vsub.s32 1, %v259
    %v261 = vrot.slane %v252, %v260
    %vm264 = vcmask 523264
    %v266 = vsel %vm264, %v235, 0
    %268 = vmatprep.subr.mxu0 %v237
    %269 = vmatpush1.msra.mxu0 %v236
    %270 = vmatprep.subr.mxu0 %v239
    %271 = vmatpush1.msra.mxu0 %v238
    %272 = vmatprep.subr.mxu0 %v241
    %273 = vmatpush1.msra.mxu0 %v240
    %274 = vmatprep.subr.mxu0 %v243
    %275 = vmatpush1.msra.mxu0 %v242
    %276 = vmatprep.subr.mxu0 %v245
    %277 = vmatpush1.msra.mxu0 %v244
    %278 = vmatprep.subr.mxu0 %v247
    %279 = vmatpush1.msra.mxu0 %v246
    %280 = vmatprep.subr.mxu0 %v249
    %281 = vmatpush1.msra.mxu0 %v248
    %282 = vmatprep.subr.mxu0 %v251
    %283 = vmatpush1.msra.mxu0 %v250
    %284 = vmatprep.subr.mxu0 0.0
    %285 = vmatpush1.msra.mxu0 0.0
    %286 = vmatprep.subr.mxu0 0.0
    %287 = vmatpush1.msra.mxu0 0.0
    %288 = vmatprep.subr.mxu0 0.0
    %289 = vmatpush1.msra.mxu0 0.0
    %290 = vmatprep.subr.mxu0 0.0
    %291 = vmatpush1.msra.mxu0 0.0
    %292 = vmatprep.subr.mxu0 0.0
    %293 = vmatpush1.msra.mxu0 0.0
    %294 = vmatprep.subr.mxu0 0.0
    %295 = vmatpush1.msra.mxu0 0.0
    %296 = vmatprep.subr.mxu0 0.0
    %297 = vmatpush1.msra.mxu0 0.0
    %298 = vmatprep.subr.mxu0 0.0
    %299 = vmatpush1.msra.mxu0 0.0
    %300 = vmatprep.subr.mxu0 0.0
    %301 = vmatpush1.msra.mxu0 0.0
    %302 = vmatprep.subr.mxu0 0.0
    %303 = vmatpush1.msra.mxu0 0.0
    %304 = vmatprep.subr.mxu0 0.0
    %305 = vmatpush1.msra.mxu0 0.0
    %306 = vmatprep.subr.mxu0 0.0
    %307 = vmatpush1.msra.mxu0 0.0
    %308 = vmatprep.subr.mxu0 0.0
    %309 = vmatpush1.msra.mxu0 0.0
    %310 = vmatprep.subr.mxu0 0.0
    %311 = vmatpush1.msra.mxu0 0.0
    %312 = vmatprep.subr.mxu0 0.0
    %313 = vmatpush1.msra.mxu0 0.0
    %314 = vmatprep.subr.mxu0 0.0
    %315 = vmatpush1.msra.mxu0 0.0
    %316 = vmatprep.subr.mxu0 0.0
    %317 = vmatpush1.msra.mxu0 0.0
    %318 = vmatprep.subr.mxu0 0.0
    %319 = vmatpush1.msra.mxu0 0.0
    %320 = vmatprep.subr.mxu0 0.0
    %321 = vmatpush1.msra.mxu0 0.0
    %322 = vmatprep.subr.mxu0 0.0
    %323 = vmatpush1.msra.mxu0 0.0
    %324 = vmatprep.subr.mxu0 0.0
    %325 = vmatpush1.msra.mxu0 0.0
    %326 = vmatprep.subr.mxu0 0.0
    %327 = vmatpush1.msra.mxu0 0.0
    %328 = vmatprep.subr.mxu0 0.0
    %329 = vmatpush1.msra.mxu0 0.0
    %330 = vmatprep.subr.mxu0 0.0
    %331 = vmatpush1.msra.mxu0 0.0
    %332 = vmatprep.mubr.f32.mxu0 0.0
    %333 = vmatmul.mubr.f32.gmra.mrb[0].mxu0 %v266
    %v334 = vpop.f32.mrb[0].mxu0
    %v335 = vadd.f32 %v257, %v334
    %v336 = vpop.f32.mrb[0].mxu0
    %v337 = vadd.f32 %v261, %v336
    %338 = vdwg.mxu0
    %v339 = vmax.f32 %v337, -20.0
    %v340 = vmin.f32 %v339, 2.0
    %v341 = vmul.f32 %v340, 1.442695
    %v342 = vpow.pop %v341
    %v343 = vld [vmem:[%s7] sm:$0xff]
    %v344 = vmul.f32 %v342, %v343
    %v345 = vadd.f32 %v335, %v344
    %v346 = vsub.f32 0.6931472, %v345
    %v347 = vmul.f32 %v345, -2.0
    %v348 = vmax.f32 %v347, 0.0
    %vm349 = vcmp.ne.f32.partialorder %v347, %v347
    %v350 = vadd.f32 %v347, 0.0
    %v351 = vand.u32 2147483647, %v347
    %v352 = vsub.f32 0.0, %v351
    %v353 = vmul.f32 %v352, 1.442695
    %v354 = vpow.pop %v353
    %v355 = vadd.f32 %v354, 1.0
    %v356 = vlog2.pop %v355
    %v357 = vmul.f32 %v356, 0.6931472
    %v358 = vmul.f32 -0.5, %v354
    %v359 = vadd.f32 %v358, 1.0
    %v360 = vmul.f32 %v359, %v354
    %v361 = vand.u32 2147483647, %v354
    %vm362 = vcmp.lt.f32.partialorder %v361, 0.0004427343
    %v363 = vsel %vm362, %v360, %v357
    %v364 = vadd.f32 %v348, %v363
    %v365 = vsel %vm349, %v350, %v364
    %v366 = vsub.f32 %v346, %v365
    %v367 = vmul.f32 %v366, 2.0
    %v368 = vmul.f32 %v343, -0.5
    %v369 = vmul.f32 %v368, %v343
    %v370 = vsub.f32 %v369, %v340
    %v371 = vsub.f32 %v370, %v367
    %372 = vadd.xlane.f32.xlu0 %v371
    %v373 = vpop.xlane.xlu0 %372
    %v374 = vsub.f32 %v373, 5.513631
    %v375 = vtanh.pop %v345
    %376 = vst [vmem:[#allocation5] sm:$0xff] %v375
    %377 = vst [vmem:[#allocation6] sm:$0xff] %v374
    // Predicated region
    $region38: #{tpu_custom_call.1} parent=1 // pred_check
      _
    $region39: #{tpu_custom_call.1} parent=1 // pred_check_branch
      %379 = sbr.rel (0) target = $region41
    $region40: #{tpu_custom_call.1} parent=1 // pred_region
      %s381 = ssub.s32 128, 128
      %382 = vsyncadd [#allocation4], %s381
      %s384 = sshll.u32 [#allocation5], 4
      %s385 = int_to_ptr.vmem [resolvable:$true] %s384
      %387 = dma.vmem_to_hbm [thread:$0]  %s385, 128, %s8, [#allocation4]
    $region41: #{tpu_custom_call.1} parent=1 // pred_fallthru
      _
    // Predicated region
    $region42: #{tpu_custom_call.1} parent=1 // pred_check
      _
    $region43: #{tpu_custom_call.1} parent=1 // pred_check_branch
      %389 = sbr.rel (0) target = $region45
    $region44: #{tpu_custom_call.1} parent=1 // pred_region
      %s391 = ssub.s32 128, 128
      %392 = vsyncadd [#allocation7], %s391
      %s394 = sshll.u32 [#allocation6], 4
      %s395 = int_to_ptr.vmem [resolvable:$true] %s394
      %397 = dma.vmem_to_hbm [thread:$0]  %s395, 128, %s9, [#allocation7]
    $region45: #{tpu_custom_call.1} parent=1 // pred_fallthru
      _
    // Predicated region
    $region46: #{tpu_custom_call.1} parent=1 // pred_check
      _
    $region47: #{tpu_custom_call.1} parent=1 // pred_check_branch
      %399 = sbr.rel (0) target = $region49
    $region48: #{tpu_custom_call.1} parent=1 // pred_region
      %400 = dma.done [#allocation4], 128
    $region49: #{tpu_custom_call.1} parent=1 // pred_fallthru
      _
    // Predicated region
    $region50: #{tpu_custom_call.1} parent=1 // pred_check
      _
    $region51: #{tpu_custom_call.1} parent=1 // pred_check_branch
      %402 = sbr.rel (0) target = $region53
    $region52: #{tpu_custom_call.1} parent=1 // pred_region
      %403 = dma.done [#allocation7], 128
    $region53: #{tpu_custom_call.1} parent=1 // pred_fallthru
      _
    %404 = vsyncpa [#allocation3], 1
    %405 = vsyncpa [#allocation4], 1
    %406 = vsyncpa [#allocation7], 1

</llo_original>
